<compile_context>
chip_gen: v7x
topology: tpu7x:2x2x1
jax: 0.10.0
libtpu: 0.0.40
codegen_flags: <defaults>
</compile_context>

<pallas_src>
import functools

import jax
import jax.numpy as jnp
from jax import lax
from jax.experimental import pallas as pl
from jax.experimental.pallas import tpu as pltpu


_SINGLE_BUFFER_BYTES = 4 * 1024 * 1024   # single-buffer the weight above this


def _vmem_capacity_bytes():
    """Physical VMEM per TensorCore (generation-aware); conservative fallback."""
    try:
        cap = getattr(pltpu.get_tpu_info(), "vmem_capacity_bytes", None)
        if cap:
            return int(cap)
    except Exception:
        pass
    return 64 * 1024 * 1024   # assume the smallest part (v7x)


def _patch_embed_kernel(x_ref, w_ref, b_ref, o_ref):
    # x_ref : (tm, K) tile of patch rows (compute dtype)
    # w_ref : (K, D)  full projection weight (compute dtype, grid-invariant)
    # b_ref : (1, D)  f32 bias (grid-invariant)
    # o_ref : (tm, D) output tile at the true embed_dim
    acc = jnp.dot(x_ref[...], w_ref[...], preferred_element_type=jnp.float32)
    o_ref[...] = (acc + b_ref[...]).astype(o_ref.dtype)


def _resident_spec(block_shape, single_buffer):
    """BlockSpec for a grid-invariant operand (index_map always zeros).

    For large operands request a single VMEM buffer (pl.Buffered(1)) - the
    block never changes with the grid index, so the default double buffer only
    wastes VMEM.  Falls back to default pipelining if this JAX build rejects
    single buffering.
    """
    index_map = lambda i: (0,) * len(block_shape)
    if single_buffer:
        try:
            return pl.BlockSpec(block_shape, index_map,
                                pipeline_mode=pl.Buffered(1))
        except Exception:
            pass
    return pl.BlockSpec(block_shape, index_map)


def _choose_tile_m(M, K, D, in_bytes, out_bytes, budget_bytes, w_bufs):
    """Largest row tile that fits the VMEM budget, biased toward exact / even
    grids (megacore balance on v7x) while staying big enough to amortize the
    ~0.35us per-grid-step overhead.  Returned tiles are multiples of 8 or == M
    (full-dim exemption), so the second-minor block constraint always holds.
    """

    def vmem_use(tm):
        return (w_bufs * K * D * in_bytes      # resident weight
                + 2 * D * 4                    # bias (tiny, double buffered)
                + 2 * tm * K * in_bytes        # input double buffer
                + 2 * tm * D * out_bytes       # output double buffer
                + tm * D * 4                   # f32 dot result
                + (1 << 20))                   # Mosaic internal scratch margin

    # Small problems: one block covering every row (no grid overhead).
    if M <= 1024 and vmem_use(M) <= budget_bytes:
        return M

    candidates = (4096, 3072, 2048, 1536, 1024, 768, 512, 384, 256, 128)
    fits = [t for t in candidates if t <= M and vmem_use(t) <= budget_bytes]
    if not fits:
        # Weight (nearly) exhausts the budget; fall back to the smallest tile
        # and rely on the vmem_limit headroom.  TODO(synk): K-split path.
        return 128 if M >= 128 else M

    best = fits[0]                       # largest fitting tile
    floor = max(best // 2, 512)
    good = [t for t in fits if t >= floor]
    grid = lambda t: -(-M // t)
    # Prefer exact division (no ragged tail pass) and even grids (two v7x TCs),
    # but never drop below half of the largest fitting tile.
    for pred in (lambda t: M % t == 0 and grid(t) % 2 == 0,
                 lambda t: M % t == 0,
                 lambda t: grid(t) % 2 == 0):
        sel = [t for t in good if pred(t)]
        if sel:
            return sel[0]
    return best


def patch_embed_matmul(patches, w_kd, bias2d, *, out_dtype=None, tm=None):
    """out (M, D) = patches (M, K) @ w_kd (K, D) + bias2d (1, D).

    K, D and M are used at their true sizes (full-array-dim blocks), a cdiv
    grid handles the ragged final row block, and no pad/slice passes are made.
    """
    M, K = patches.shape
    K2, D = w_kd.shape
    assert K == K2, (K, K2)
    assert bias2d.shape == (1, D), bias2d.shape
    if out_dtype is None:
        out_dtype = patches.dtype
    in_bytes = jnp.dtype(patches.dtype).itemsize
    out_bytes = jnp.dtype(out_dtype).itemsize

    vmem_cap = _vmem_capacity_bytes()
    budget = (vmem_cap * 11) // 16       # ~88 MiB on 128 MiB parts, ~44 MiB on v7x
    limit = (vmem_cap * 25) // 32        # ~100 MiB / ~50 MiB scoped limit

    w_bytes = K * D * in_bytes
    single_buffer_w = w_bytes >= _SINGLE_BUFFER_BYTES
    w_bufs = 1 if single_buffer_w else 2

    if tm is None:
        tm = _choose_tile_m(M, K, D, in_bytes, out_bytes, budget, w_bufs)
    grid_m = pl.cdiv(M, tm)

    # Keep the scoped-VMEM limit above the estimated use (with headroom for a
    # second weight buffer in case single buffering is unavailable), capped
    # below the physical capacity.
    est_use = (w_bufs * w_bytes + 2 * D * 4 + 2 * tm * K * in_bytes
               + 2 * tm * D * out_bytes + tm * D * 4 + (2 << 20))
    limit = max(limit, min(est_use + w_bytes, vmem_cap - (2 << 20)))

    cost = pl.CostEstimate(
        flops=2 * M * K * D,
        transcendentals=0,
        bytes_accessed=(M * K * in_bytes + w_bytes + D * 4 + M * D * out_bytes),
    )

    return pl.pallas_call(
        _patch_embed_kernel,
        out_shape=jax.ShapeDtypeStruct((M, D), out_dtype),
        grid_spec=pltpu.PrefetchScalarGridSpec(
            num_scalar_prefetch=0,
            grid=(grid_m,),
            in_specs=[
                pl.BlockSpec((tm, K), lambda i: (i, 0)),
                _resident_spec((K, D), single_buffer_w),
                _resident_spec((1, D), False),
            ],
            out_specs=pl.BlockSpec((tm, D), lambda i: (i, 0)),
        ),
        compiler_params=pltpu.CompilerParams(
            dimension_semantics=("parallel",),
            vmem_limit_bytes=int(limit),
        ),
        cost_estimate=cost,
    )(patches, w_kd, bias2d)


def prepare_patch_embed_params(conv_w, conv_b, *, compute_dtype=jnp.bfloat16):
    """One-time parameter prep (hoisted out of the jitted forward).

    conv_w : (D, C, p, p) PyTorch Conv2d weight layout
    conv_b : (D,)
    Returns (w_kd, bias2d): w_kd (K, D) in compute_dtype with K = C*p*p and
    PyTorch's (C, kh, kw) flatten order; bias2d (1, D) kept in f32.  No lane
    padding - the kernel uses the true K and D.
    """
    D, C, ph, pw = conv_w.shape
    K = C * ph * pw
    w_kd = conv_w.reshape(D, K).T.astype(compute_dtype)
    bias2d = conv_b.astype(jnp.float32).reshape(1, D)
    return w_kd, bias2d


def patch_embed_forward(x, w_kd, bias2d, *, patch_size, embed_dim=None,
                        out_dtype=None, tm=None):
    """Forward pass matching PatchEmbed.forward (norm_layer=None).

    x        : (B, T, C, H, W)
    w_kd     : (K, D) prepared weight, K = C*p*p (see prepare_patch_embed_params)
    bias2d   : (1, D) f32 bias
    out_dtype: None -> x.dtype (module semantics); pass e.g. jnp.bfloat16 to
               cut output HBM traffic when the consumer tolerates it.
    Returns (B, T, Ho*Wo, D).
    """
    B, T, C, H, W = x.shape
    p = patch_size
    assert H % p == 0 and W % p == 0, (H, W, p)
    Ho, Wo = H // p, W // p
    K, D = w_kd.shape
    assert K == C * p * p, (K, C, p)
    if embed_dim is not None:
        assert embed_dim == D, (embed_dim, D)
    M = B * T * Ho * Wo
    compute_dtype = w_kd.dtype
    if out_dtype is None:
        out_dtype = x.dtype

    # Patchify: (b t c h w) -> (M, K) with feature order (C, kh, kw).  Cast to
    # the compute dtype first so the single fused XLA transpose pass moves
    # bf16-sized bytes.  No K / M padding and no output slicing anywhere.
    # TODO(synk): fuse this rearrange into the kernel to read x from HBM once;
    # the in-kernel lane-split relayout is not yet validated on Mosaic.
    xp = x.astype(compute_dtype).reshape(B * T, C, Ho, p, Wo, p)
    xp = jnp.transpose(xp, (0, 2, 4, 1, 3, 5))
    patches = xp.reshape(M, K)

    out = patch_embed_matmul(patches, w_kd, bias2d, out_dtype=out_dtype, tm=tm)
    return out.reshape(B, T, Ho * Wo, D)


if __name__ == "__main__":
    key = jax.random.PRNGKey(0)

    def conv_reference(x, conv_w, conv_b, p):
        B, T, C, H, W = x.shape
        D = conv_w.shape[0]
        Ho, Wo = H // p, W // p
        y = lax.conv_general_dilated(
            x.reshape(B * T, C, H, W), conv_w,
            window_strides=(p, p), padding="VALID",
            dimension_numbers=("NCHW", "OIHW", "NCHW"),
        ) + conv_b[None, :, None, None]
        return y.reshape(B, T, D, Ho * Wo).transpose(0, 1, 3, 2)

    # ---- Case 1: small module-consistent config ----------------------------
    B, T, C, H, W = 2, 3, 4, 16, 16
    p, D = 4, 32
    k1, k2, k3, key = jax.random.split(key, 4)
    x = jax.random.normal(k1, (B, T, C, H, W), dtype=jnp.float32)
    conv_w = 0.02 * jax.random.normal(k2, (D, C, p, p), dtype=jnp.float32)
    conv_b = 0.01 * jax.random.normal(k3, (D,), dtype=jnp.float32)
    ref = conv_reference(x, conv_w, conv_b, p)

    fwd = jax.jit(functools.partial(patch_embed_forward, patch_size=p))

    # f32 compute path: tight check against the f32 conv reference.
    w32, b32 = prepare_patch_embed_params(conv_w, conv_b,
                                          compute_dtype=jnp.float32)
    out32 = jax.block_until_ready(fwd(x, w32, b32))
    assert out32.shape == (B, T, (H // p) * (W // p), D), out32.shape
    assert out32.dtype == x.dtype
    err32 = float(jnp.abs(out32 - ref).max())
    assert err32 < 1e-4, err32

    # bf16 compute path (default) with bf16 output (out_dtype option).
    wbf, bbf = prepare_patch_embed_params(conv_w, conv_b)
    fwd_bf = jax.jit(functools.partial(patch_embed_forward, patch_size=p,
                                       out_dtype=jnp.bfloat16))
    outbf = jax.block_until_ready(fwd_bf(x, wbf, bbf))
    assert outbf.shape == (B, T, (H // p) * (W // p), D), outbf.shape
    assert outbf.dtype == jnp.bfloat16
    errbf = float(jnp.abs(outbf.astype(jnp.float32) - ref).max())
    assert errbf < 2e-2, errbf

    # ---- Case 2: multi-step grid with a ragged final row block and ---------
    #      non-lane-aligned K (=48) / D (=80); f32 for a tight check.
    B2, T2, C2, H2, W2 = 2, 1, 3, 96, 96
    p2, D2 = 4, 80
    k1, k2, k3, key = jax.random.split(key, 4)
    x2 = jax.random.normal(k1, (B2, T2, C2, H2, W2), dtype=jnp.float32)
    cw2 = 0.02 * jax.random.normal(k2, (D2, C2, p2, p2), dtype=jnp.float32)
    cb2 = 0.01 * jax.random.normal(k3, (D2,), dtype=jnp.float32)
    ref2 = conv_reference(x2, cw2, cb2, p2)
    w2p, b2p = prepare_patch_embed_params(cw2, cb2, compute_dtype=jnp.float32)
    out2 = jax.block_until_ready(
        jax.jit(functools.partial(patch_embed_forward, patch_size=p2))(x2, w2p, b2p))
    assert out2.shape == (B2, T2, (H2 // p2) * (W2 // p2), D2), out2.shape
    err2 = float(jnp.abs(out2 - ref2).max())
    assert err2 < 1e-4, err2

    print("KERNEL_OK")
</pallas_src>

<mosaic_0001>
module attributes {stable_mosaic.version = 11 : i64} {
  func.func @_patch_embed_kernel(%arg0: i32, %arg1: memref<96x64xf32, #tpu.memory_space<vmem>>, %arg2: memref<64x32xf32, #tpu.memory_space<vmem>>, %arg3: memref<1x32xf32, #tpu.memory_space<vmem>>, %arg4: memref<96x32xf32, #tpu.memory_space<vmem>>) attributes {dimension_semantics = [#tpu.dimension_semantics<parallel>], iteration_bounds = array<i64: 1>, scalar_prefetch = 0 : i64, scratch_operands = 0 : i64, tpu.core_type = #tpu.core_type<tc>, window_params = [{transform_indices = @transform_0, window_bounds = array<i64: 96, 64>}, {pipeline_mode = #tpu.pipeline_mode<synchronous>, transform_indices = @transform_1, window_bounds = array<i64: 64, 32>}, {pipeline_mode = #tpu.pipeline_mode<synchronous>, transform_indices = @transform_2, window_bounds = array<i64: 1, 32>}, {transform_indices = @transform_3, window_bounds = array<i64: 96, 32>}]} {
    %c0 = arith.constant 0 : index
    %c0_0 = arith.constant 0 : index
    %0 = vector.load %arg1[%c0, %c0_0] : memref<96x64xf32, #tpu.memory_space<vmem>>, vector<96x64xf32>
    %c0_1 = arith.constant 0 : index
    %c0_2 = arith.constant 0 : index
    %1 = vector.load %arg2[%c0_1, %c0_2] : memref<64x32xf32, #tpu.memory_space<vmem>>, vector<64x32xf32>
    %cst = arith.constant dense<0.000000e+00> : vector<96x32xf32>
    %2 = tpu.matmul %0, %1, %cst {dimension_numbers = #tpu.dot_dimension_numbers<[1], [0], [0], [1], [0, 0, 1, 1], [], []>} : vector<96x64xf32>, vector<64x32xf32>, vector<96x32xf32> -> vector<96x32xf32>
    %c0_3 = arith.constant 0 : index
    %c0_4 = arith.constant 0 : index
    %3 = vector.load %arg3[%c0_3, %c0_4] : memref<1x32xf32, #tpu.memory_space<vmem>>, vector<1x32xf32>
    %4 = vector.broadcast %3 : vector<1x32xf32> to vector<96x32xf32>
    %5 = arith.addf %2, %4 : vector<96x32xf32>
    %c0_5 = arith.constant 0 : index
    %c0_6 = arith.constant 0 : index
    %6 = vector.load %arg4[%c0_5, %c0_6] : memref<96x32xf32, #tpu.memory_space<vmem>>, vector<96x32xf32>
    tpu.vector_store %arg4[%c0_5, %c0_6], %5 {strides = array<i32>} : memref<96x32xf32, #tpu.memory_space<vmem>>, vector<96x32xf32>,
    return
  }
  func.func @transform_0(%arg0: i32) -> (i32, i32) {
    %c0_i32 = arith.constant 0 : i32
    %c0_i32_0 = arith.constant 0 : i32
    return %arg0, %c0_i32 : i32, i32
  }
  func.func @transform_1(%arg0: i32) -> (i32, i32) {
    %c0_i32 = arith.constant 0 : i32
    %c0_i32_0 = arith.constant 0 : i32
    %c0_i32_1 = arith.constant 0 : i32
    return %c0_i32, %c0_i32_0 : i32, i32
  }
  func.func @transform_2(%arg0: i32) -> (i32, i32) {
    %c0_i32 = arith.constant 0 : i32
    %c0_i32_0 = arith.constant 0 : i32
    %c0_i32_1 = arith.constant 0 : i32
    return %c0_i32, %c0_i32_0 : i32, i32
  }
  func.func @transform_3(%arg0: i32) -> (i32, i32) {
    %c0_i32 = arith.constant 0 : i32
    %c0_i32_0 = arith.constant 0 : i32
    return %arg0, %c0_i32 : i32, i32
  }
}

</mosaic_0001>

<llo_original>
// kernel: patch_embed_forward.1
$region0: #{patch_embed_forward.1}
  #allocation0 [shape = 'u32[]', space=smem, size = 0x4, offset = 0x4, fixed_abs, tag = 'smem constant byte address 0x4 - core index']
  #allocation1 [shape = 'u32[144,128]{1,0:T(1,128)}', space=vmem, size = 0x12000, scoped, tag = 'internal scratch']
  %s0 = inlined_call_operand.vmem [shape: f32[96,64], index: 0, kind: input, shape index: {}]
  %s1 = inlined_call_operand.vmem [shape: f32[64,32], index: 1, kind: input, shape index: {}]
  %s2 = inlined_call_operand.vmem [shape: f32[1,32], index: 2, kind: input, shape index: {}]
  %s3 = inlined_call_operand.hbm [shape: f32[96,32], index: 3, kind: output, shape index: {}]
  %s4 = sld [smem:[#allocation0]]
  $region22: #{patch_embed_forward.1} parent=0
    _
  %s6 = ssub.s32 1, %s4
  %s7 = scalar_select 0, %s6, %s4
  $region1: #{patch_embed_forward.1} parent=0
    #allocation2 [shape = 'u8[49152]{0}', space=vmem, size = 0xc000, scoped, tag = 'output window, operand 0, single buffered']
    #allocation3 [shape = 's32[1]{0}', space=sflag, size = 0x4, scoped, tag = 'scoped memory for patch_embed_forward.1']
    %8 = vsyncpa [#allocation3], 0
    // Predicated region
    $region2: #{patch_embed_forward.1} parent=1 // pred_check
      _
    $region3: #{patch_embed_forward.1} parent=1 // pred_check_branch
      %10 = sbr.rel (0) target = $region5
    $region4: #{patch_embed_forward.1} parent=1 // pred_region
      _
    $region5: #{patch_embed_forward.1} parent=1 // pred_fallthru
      _
    // Predicated region
    $region6: #{patch_embed_forward.1} parent=1 // pred_check
      _
    $region7: #{patch_embed_forward.1} parent=1 // pred_check_branch
      %12 = sbr.rel (0) target = $region9
    $region8: #{patch_embed_forward.1} parent=1 // pred_region
      _
    $region9: #{patch_embed_forward.1} parent=1 // pred_fallthru
      _
    // Predicated region
    $region10: #{patch_embed_forward.1} parent=1 // pred_check
      _
    $region11: #{patch_embed_forward.1} parent=1 // pred_check_branch
      %14 = sbr.rel (0) target = $region13
    $region12: #{patch_embed_forward.1} parent=1 // pred_region
      _
    $region13: #{patch_embed_forward.1} parent=1 // pred_fallthru
      _
    %v15 = vld [vmem:[%s0] sm:$0xff]
    %v16 = vld [vmem:[%s0 + $0x8] sm:$0xff]
    %v17 = vld [vmem:[%s0 + $0x10] sm:$0xff]
    %v18 = vld [vmem:[%s0 + $0x18] sm:$0xff]
    %v19 = vld [vmem:[%s0 + $0x20] sm:$0xff]
    %v20 = vld [vmem:[%s0 + $0x28] sm:$0xff]
    %v21 = vld [vmem:[%s0 + $0x30] sm:$0xff]
    %v22 = vld [vmem:[%s0 + $0x38] sm:$0xff]
    %v23 = vld [vmem:[%s0 + $0x40] sm:$0xff]
    %v24 = vld [vmem:[%s0 + $0x48] sm:$0xff]
    %v25 = vld [vmem:[%s0 + $0x50] sm:$0xff]
    %v26 = vld [vmem:[%s0 + $0x58] sm:$0xff]
    %v27 = vld [vmem:[%s1] sm:$0xff]
    %v28 = vld [vmem:[%s1 + $0x8] sm:$0xff]
    %v29 = vld [vmem:[%s1 + $0x10] sm:$0xff]
    %v30 = vld [vmem:[%s1 + $0x18] sm:$0xff]
    %v31 = vld [vmem:[%s1 + $0x20] sm:$0xff]
    %v32 = vld [vmem:[%s1 + $0x28] sm:$0xff]
    %v33 = vld [vmem:[%s1 + $0x30] sm:$0xff]
    %v34 = vld [vmem:[%s1 + $0x38] sm:$0xff]
    %v35 = vld [vmem:[%s2] sm:$0x1]
    %v37 = vlaneseq
    %v38 = vshrl.u32 %v37, 7
    %v39 = vsub.s32 0, %v38
    %v40 = vrot.slane %v35, %v39
    %vm42 = vcmask 523264
    %v44 = vsel %vm42, %v15, 0
    %v47 = vsel %vm42, %v16, 0
    %v50 = vsel %vm42, %v17, 0
    %v53 = vsel %vm42, %v18, 0
    %v56 = vsel %vm42, %v19, 0
    %v59 = vsel %vm42, %v20, 0
    %v62 = vsel %vm42, %v21, 0
    %v65 = vsel %vm42, %v22, 0
    %v68 = vsel %vm42, %v23, 0
    %v71 = vsel %vm42, %v24, 0
    %v74 = vsel %vm42, %v25, 0
    %v77 = vsel %vm42, %v26, 0
    %79 = vmatprep.subr.mxu0 0.0
    %80 = vmatpush1.msra.mxu0 %v27
    %81 = vmatprep.subr.mxu0 0.0
    %82 = vmatpush1.msra.mxu0 %v28
    %83 = vmatprep.subr.mxu0 0.0
    %84 = vmatpush1.msra.mxu0 %v29
    %85 = vmatprep.subr.mxu0 0.0
    %86 = vmatpush1.msra.mxu0 %v30
    %87 = vmatprep.subr.mxu0 0.0
    %88 = vmatpush1.msra.mxu0 %v31
    %89 = vmatprep.subr.mxu0 0.0
    %90 = vmatpush1.msra.mxu0 %v32
    %91 = vmatprep.subr.mxu0 0.0
    %92 = vmatpush1.msra.mxu0 %v33
    %93 = vmatprep.subr.mxu0 0.0
    %94 = vmatpush1.msra.mxu0 %v34
    %95 = vmatprep.subr.mxu0 0.0
    %96 = vmatpush1.msra.mxu0 0.0
    %97 = vmatprep.subr.mxu0 0.0
    %98 = vmatpush1.msra.mxu0 0.0
    %99 = vmatprep.subr.mxu0 0.0
    %100 = vmatpush1.msra.mxu0 0.0
    %101 = vmatprep.subr.mxu0 0.0
    %102 = vmatpush1.msra.mxu0 0.0
    %103 = vmatprep.subr.mxu0 0.0
    %104 = vmatpush1.msra.mxu0 0.0
    %105 = vmatprep.subr.mxu0 0.0
    %106 = vmatpush1.msra.mxu0 0.0
    %107 = vmatprep.subr.mxu0 0.0
    %108 = vmatpush1.msra.mxu0 0.0
    %109 = vmatprep.subr.mxu0 0.0
    %110 = vmatpush1.msra.mxu0 0.0
    %111 = vmatprep.subr.mxu0 0.0
    %112 = vmatpush1.msra.mxu0 0.0
    %113 = vmatprep.subr.mxu0 0.0
    %114 = vmatpush1.msra.mxu0 0.0
    %115 = vmatprep.subr.mxu0 0.0
    %116 = vmatpush1.msra.mxu0 0.0
    %117 = vmatprep.subr.mxu0 0.0
    %118 = vmatpush1.msra.mxu0 0.0
    %119 = vmatprep.subr.mxu0 0.0
    %120 = vmatpush1.msra.mxu0 0.0
    %121 = vmatprep.subr.mxu0 0.0
    %122 = vmatpush1.msra.mxu0 0.0
    %123 = vmatprep.subr.mxu0 0.0
    %124 = vmatpush1.msra.mxu0 0.0
    %125 = vmatprep.subr.mxu0 0.0
    %126 = vmatpush1.msra.mxu0 0.0
    %127 = vmatprep.subr.mxu0 0.0
    %128 = vmatpush1.msra.mxu0 0.0
    %129 = vmatprep.subr.mxu0 0.0
    %130 = vmatpush1.msra.mxu0 0.0
    %131 = vmatprep.subr.mxu0 0.0
    %132 = vmatpush1.msra.mxu0 0.0
    %133 = vmatprep.subr.mxu0 0.0
    %134 = vmatpush1.msra.mxu0 0.0
    %135 = vmatprep.subr.mxu0 0.0
    %136 = vmatpush1.msra.mxu0 0.0
    %137 = vmatprep.subr.mxu0 0.0
    %138 = vmatpush1.msra.mxu0 0.0
    %139 = vmatprep.subr.mxu0 0.0
    %140 = vmatpush1.msra.mxu0 0.0
    %141 = vmatprep.subr.mxu0 0.0
    %142 = vmatpush1.msra.mxu0 0.0
    %143 = vmatprep.mubr.f32.mxu0 0.0
    %144 = vmatmul.mubr.f32.gmra.mrb[0].mxu0 %v44
    %v145 = vpop.f32.mrb[0].mxu0
    %v146 = vadd.f32 %v40, %v145
    %v147 = vpop.f32.mrb[0].mxu0
    %148 = vmatprep.mubr.f32.mxu0 0.0
    %149 = vmatmul.mubr.f32.gmra.mrb[0].mxu0 %v47
    %v150 = vpop.f32.mrb[0].mxu0
    %v151 = vadd.f32 %v40, %v150
    %v152 = vpop.f32.mrb[0].mxu0
    %153 = vmatprep.mubr.f32.mxu0 0.0
    %154 = vmatmul.mubr.f32.gmra.mrb[0].mxu0 %v50
    %v155 = vpop.f32.mrb[0].mxu0
    %v156 = vadd.f32 %v40, %v155
    %v157 = vpop.f32.mrb[0].mxu0
    %158 = vmatprep.mubr.f32.mxu0 0.0
    %159 = vmatmul.mubr.f32.gmra.mrb[0].mxu0 %v53
    %v160 = vpop.f32.mrb[0].mxu0
    %v161 = vadd.f32 %v40, %v160
    %v162 = vpop.f32.mrb[0].mxu0
    %163 = vmatprep.mubr.f32.mxu0 0.0
    %164 = vmatmul.mubr.f32.gmra.mrb[0].mxu0 %v56
    %v165 = vpop.f32.mrb[0].mxu0
    %v166 = vadd.f32 %v40, %v165
    %v167 = vpop.f32.mrb[0].mxu0
    %168 = vmatprep.mubr.f32.mxu0 0.0
    %169 = vmatmul.mubr.f32.gmra.mrb[0].mxu0 %v59
    %v170 = vpop.f32.mrb[0].mxu0
    %v171 = vadd.f32 %v40, %v170
    %v172 = vpop.f32.mrb[0].mxu0
    %173 = vmatprep.mubr.f32.mxu0 0.0
    %174 = vmatmul.mubr.f32.gmra.mrb[0].mxu0 %v62
    %v175 = vpop.f32.mrb[0].mxu0
    %v176 = vadd.f32 %v40, %v175
    %v177 = vpop.f32.mrb[0].mxu0
    %178 = vmatprep.mubr.f32.mxu0 0.0
    %179 = vmatmul.mubr.f32.gmra.mrb[0].mxu0 %v65
    %v180 = vpop.f32.mrb[0].mxu0
    %v181 = vadd.f32 %v40, %v180
    %v182 = vpop.f32.mrb[0].mxu0
    %183 = vmatprep.mubr.f32.mxu0 0.0
    %184 = vmatmul.mubr.f32.gmra.mrb[0].mxu0 %v68
    %v185 = vpop.f32.mrb[0].mxu0
    %v186 = vadd.f32 %v40, %v185
    %v187 = vpop.f32.mrb[0].mxu0
    %188 = vmatprep.mubr.f32.mxu0 0.0
    %189 = vmatmul.mubr.f32.gmra.mrb[0].mxu0 %v71
    %v190 = vpop.f32.mrb[0].mxu0
    %v191 = vadd.f32 %v40, %v190
    %v192 = vpop.f32.mrb[0].mxu0
    %193 = vmatprep.mubr.f32.mxu0 0.0
    %194 = vmatmul.mubr.f32.gmra.mrb[0].mxu0 %v74
    %v195 = vpop.f32.mrb[0].mxu0
    %v196 = vadd.f32 %v40, %v195
    %v197 = vpop.f32.mrb[0].mxu0
    %198 = vmatprep.mubr.f32.mxu0 0.0
    %199 = vmatmul.mubr.f32.gmra.mrb[0].mxu0 %v77
    %v200 = vpop.f32.mrb[0].mxu0
    %v201 = vadd.f32 %v40, %v200
    %v202 = vpop.f32.mrb[0].mxu0
    %203 = vdwg.mxu0
    %vm204 = vcmask 261120
    %205 = vst.msk [vmem:[#allocation2] sm:$0xff] %vm204, %v146
    %206 = vst.msk [vmem:[#allocation2 + $0x8] sm:$0xff] %vm204, %v151
    %207 = vst.msk [vmem:[#allocation2 + $0x10] sm:$0xff] %vm204, %v156
    %208 = vst.msk [vmem:[#allocation2 + $0x18] sm:$0xff] %vm204, %v161
    %209 = vst.msk [vmem:[#allocation2 + $0x20] sm:$0xff] %vm204, %v166
    %210 = vst.msk [vmem:[#allocation2 + $0x28] sm:$0xff] %vm204, %v171
    %211 = vst.msk [vmem:[#allocation2 + $0x30] sm:$0xff] %vm204, %v176
    %212 = vst.msk [vmem:[#allocation2 + $0x38] sm:$0xff] %vm204, %v181
    %213 = vst.msk [vmem:[#allocation2 + $0x40] sm:$0xff] %vm204, %v186
    %214 = vst.msk [vmem:[#allocation2 + $0x48] sm:$0xff] %vm204, %v191
    %215 = vst.msk [vmem:[#allocation2 + $0x50] sm:$0xff] %vm204, %v196
    %216 = vst.msk [vmem:[#allocation2 + $0x58] sm:$0xff] %vm204, %v201
    // Predicated region
    $region14: #{patch_embed_forward.1} parent=1 // pred_check
      _
    $region15: #{patch_embed_forward.1} parent=1 // pred_check_branch
      %218 = sbr.rel (0) target = $region17
    $region16: #{patch_embed_forward.1} parent=1 // pred_region
      %s220 = ssub.s32 1536, 1536
      %221 = vsyncadd [#allocation3], %s220
      %s222 = sshll.u32 [#allocation2], 4
      %s223 = int_to_ptr.vmem [resolvable:$true] %s222
      %228 = dma.vmem_to_hbm [thread:$0]  %s223, 1536, %s3, [#allocation3], 128, 128, 8
    $region17: #{patch_embed_forward.1} parent=1 // pred_fallthru
      _
    // Predicated region
    $region18: #{patch_embed_forward.1} parent=1 // pred_check
      _
    $region19: #{patch_embed_forward.1} parent=1 // pred_check_branch
      %230 = sbr.rel (0) target = $region21
    $region20: #{patch_embed_forward.1} parent=1 // pred_region
      %231 = dma.done [#allocation3], 1536
    $region21: #{patch_embed_forward.1} parent=1 // pred_fallthru
      _
    %232 = vsyncpa [#allocation3], 1

</llo_original>
